<compile_context>
chip_gen: v6e
topology: v6e:2x2x1
jax: 0.10.0
libtpu: 0.0.40
codegen_flags: <defaults>
</compile_context>

<pallas_src>
import jax
import jax.numpy as jnp
from jax.experimental import pallas as pl
from jax.experimental.pallas import tpu as pltpu


def _maxpool2x2_kernel(x_ref, o_ref):
    # x_ref: (1, th, 2, wo, 2*c) -- th output rows worth of input; the two
    #        H-rows of each 2x2 window sit on dim 2, the two W-columns are
    #        packed along the lane dim (2*c).
    # o_ref: (1, th, wo, c)
    c = o_ref.shape[-1]
    top = x_ref[0, :, 0, :, :]                       # (th, wo, 2c)  rows 2i
    bot = x_ref[0, :, 1, :, :]                       # (th, wo, 2c)  rows 2i+1
    m = jnp.maximum(top, bot)                        # H-pool: pure VPU max
    # W-pool: lane-aligned halves (c is a multiple of 128 for VGG channels,
    # but the slice is correct for any c).
    o_ref[0] = jnp.maximum(m[..., :c], m[..., c:])   # (th, wo, c)


def _pick_th(ho, wo, c, itemsize, vmem_buffer_budget_bytes):
    """Output rows per grid step.

    Budget covers *all* VMEM buffers: Pallas double-buffers each input and
    output block, so one output row costs 2 * (input row-pair + output row).
    Also force at least 2 H-steps (when possible) so megacore (v7x) can shard
    the H axis and the software pipeline has something to overlap.
    """
    per_row = (2 * 2 * wo * c + wo * c) * itemsize        # in row-pair + out row
    per_row_buffered = 2 * per_row                         # double buffering
    th = max(1, min(ho, vmem_buffer_budget_bytes // per_row_buffered))
    if ho >= 2:
        th = min(th, pl.cdiv(ho, 2))                       # >= 2 grid steps
    return int(th)


def maxpool2d_2x2_nhwc(x_nhwc, *, vmem_buffer_budget_bytes=8 * 1024 * 1024):
    """2x2/stride-2 max pool on NHWC input, NHWC output (preferred entry point)."""
    n, h, w, c = x_nhwc.shape
    ho, wo = h // 2, w // 2
    assert ho > 0 and wo > 0
    # floor mode / no padding: drop a trailing odd row/col if present.
    x_nhwc = x_nhwc[:, : 2 * ho, : 2 * wo, :]
    # Free, contiguous reshape: pack each 2x2 window's H-rows on a size-2 axis
    # and its W-columns along the lane dim.
    x_packed = x_nhwc.reshape(n, ho, 2, wo, 2 * c)         # (n, ho, 2, wo, 2c)

    itemsize = jnp.dtype(x_nhwc.dtype).itemsize
    th = _pick_th(ho, wo, c, itemsize, vmem_buffer_budget_bytes)
    grid_h = pl.cdiv(ho, th)                               # no divisibility needed

    return pl.pallas_call(
        _maxpool2x2_kernel,
        out_shape=jax.ShapeDtypeStruct((n, ho, wo, c), x_nhwc.dtype),
        grid=(n, grid_h),
        in_specs=[pl.BlockSpec((1, th, 2, wo, 2 * c),
                               lambda b, i: (b, i, 0, 0, 0))],
        out_specs=pl.BlockSpec((1, th, wo, c),
                               lambda b, i: (b, i, 0, 0)),
        compiler_params=pltpu.CompilerParams(
            dimension_semantics=("parallel", "parallel")),
    )(x_packed)


def maxpool2d_2x2(x_nchw, **kwargs):
    """nn.MaxPool2d(2, 2) with the module's NCHW contract.

    # TODO(synk): the NCHW<->NHWC transposes below exist only because this
    # isolated nn.Module is NCHW; in the full network keep activations NHWC
    # (or fuse this pool as the epilogue of the preceding conv/BN/ReLU kernel)
    # and call maxpool2d_2x2_nhwc directly -- that removes ~2/3 of this
    # layer's HBM traffic and two XLA dispatches.
    """
    x_nhwc = jnp.transpose(x_nchw, (0, 2, 3, 1))           # glue: NCHW -> NHWC
    out_nhwc = maxpool2d_2x2_nhwc(x_nhwc, **kwargs)
    return jnp.transpose(out_nhwc, (0, 3, 1, 2))           # glue: NHWC -> NCHW


if __name__ == "__main__":
    key = jax.random.PRNGKey(0)
    # Shape implied by the module's forward: x33 = randn(1, 512, 28, 28).
    x = jax.random.normal(key, (1, 512, 28, 28), dtype=jnp.float32)

    # Module-contract (NCHW) path.
    y = jax.block_until_ready(maxpool2d_2x2(x))
    ref = x.reshape(1, 512, 14, 2, 14, 2).max(axis=(3, 5))   # exact reference
    assert y.shape == (1, 512, 14, 14), y.shape
    assert y.dtype == x.dtype
    assert bool(jnp.array_equal(y, ref)), "NCHW kernel result mismatch vs reference"

    # NHWC-native path (recommended for end-to-end NHWC / fusion).
    y_nhwc = jax.block_until_ready(maxpool2d_2x2_nhwc(jnp.transpose(x, (0, 2, 3, 1))))
    assert y_nhwc.shape == (1, 14, 14, 512), y_nhwc.shape
    assert bool(jnp.array_equal(y_nhwc, jnp.transpose(ref, (0, 2, 3, 1)))), \
        "NHWC kernel result mismatch vs reference"

    print("KERNEL_OK")
</pallas_src>

<mosaic_0001>
module attributes {stable_mosaic.version = 11 : i64} {
  func.func @_maxpool2x2_kernel(%arg0: i32, %arg1: i32, %arg2: memref<1x7x2x14x1024xf32, #tpu.memory_space<vmem>>, %arg3: memref<1x7x14x512xf32, #tpu.memory_space<vmem>>) attributes {dimension_semantics = [#tpu.dimension_semantics<parallel>, #tpu.dimension_semantics<parallel>], iteration_bounds = array<i64: 1, 2>, scalar_prefetch = 0 : i64, scratch_operands = 0 : i64, tpu.core_type = #tpu.core_type<tc>, window_params = [{transform_indices = @transform_0, window_bounds = array<i64: 1, 7, 2, 14, 1024>}, {transform_indices = @transform_1, window_bounds = array<i64: 1, 7, 14, 512>}]} {
    %c0 = arith.constant 0 : index
    %c0_0 = arith.constant 0 : index
    %c0_1 = arith.constant 0 : index
    %c0_2 = arith.constant 0 : index
    %c0_3 = arith.constant 0 : index
    %0 = vector.load %arg2[%c0, %c0_0, %c0_1, %c0_2, %c0_3] : memref<1x7x2x14x1024xf32, #tpu.memory_space<vmem>>, vector<1x7x1x14x1024xf32>
    %1 = vector.shape_cast %0 : vector<1x7x1x14x1024xf32> to vector<7x14x1024xf32>
    %c0_4 = arith.constant 0 : index
    %c0_5 = arith.constant 0 : index
    %c1 = arith.constant 1 : index
    %c0_6 = arith.constant 0 : index
    %c0_7 = arith.constant 0 : index
    %2 = vector.load %arg2[%c0_4, %c0_5, %c1, %c0_6, %c0_7] : memref<1x7x2x14x1024xf32, #tpu.memory_space<vmem>>, vector<1x7x1x14x1024xf32>
    %3 = vector.shape_cast %2 : vector<1x7x1x14x1024xf32> to vector<7x14x1024xf32>
    %4 = arith.maximumf %1, %3 : vector<7x14x1024xf32>
    %5 = vector.extract_strided_slice %4 {offsets = [0, 0, 0], sizes = [7, 14, 512], strides = [1, 1, 1]} : vector<7x14x1024xf32> to vector<7x14x512xf32>
    %6 = vector.extract_strided_slice %4 {offsets = [0, 0, 512], sizes = [7, 14, 512], strides = [1, 1, 1]} : vector<7x14x1024xf32> to vector<7x14x512xf32>
    %7 = arith.maximumf %5, %6 : vector<7x14x512xf32>
    %c0_8 = arith.constant 0 : index
    %c0_9 = arith.constant 0 : index
    %c0_10 = arith.constant 0 : index
    %c0_11 = arith.constant 0 : index
    %8 = vector.load %arg3[%c0_8, %c0_9, %c0_10, %c0_11] : memref<1x7x14x512xf32, #tpu.memory_space<vmem>>, vector<1x7x14x512xf32>
    %9 = vector.shape_cast %8 : vector<1x7x14x512xf32> to vector<7x14x512xf32>
    %10 = vector.shape_cast %7 : vector<7x14x512xf32> to vector<1x7x14x512xf32>
    tpu.vector_store %arg3[%c0_8, %c0_9, %c0_10, %c0_11], %10 {strides = array<i32>} : memref<1x7x14x512xf32, #tpu.memory_space<vmem>>, vector<1x7x14x512xf32>,
    return
  }
  func.func @transform_0(%arg0: i32, %arg1: i32) -> (i32, i32, i32, i32, i32) {
    %c0_i32 = arith.constant 0 : i32
    %c0_i32_0 = arith.constant 0 : i32
    %c0_i32_1 = arith.constant 0 : i32
    %c0_i32_2 = arith.constant 0 : i32
    return %arg0, %arg1, %c0_i32, %c0_i32_0, %c0_i32_1 : i32, i32, i32, i32, i32
  }
  func.func @transform_1(%arg0: i32, %arg1: i32) -> (i32, i32, i32, i32) {
    %c0_i32 = arith.constant 0 : i32
    %c0_i32_0 = arith.constant 0 : i32
    %c0_i32_1 = arith.constant 0 : i32
    return %arg0, %arg1, %c0_i32, %c0_i32_0 : i32, i32, i32, i32
  }
}

</mosaic_0001>

<llo_original>
// kernel: tpu_custom_call.1
$region0: #{tpu_custom_call.1}
  #allocation0 [shape = 'u32[]', space=smem, size = 0x4, offset = 0x4, fixed_abs, tag = 'smem constant byte address 0x4 - core index']
  #allocation1 [shape = 'u32[144,128]{1,0:T(1,128)}', space=vmem, size = 0x12000, scoped, tag = 'internal scratch']
  %s0 = inlined_call_operand.vmem [shape: f32[1,14,2,14,1024], index: 0, kind: input, shape index: {}]
  %s1 = inlined_call_operand.vmem [shape: f32[1,14,14,512], index: 1, kind: output, shape index: {}]
  %s2 = sld [smem:[#allocation0]]
  $region37: #{tpu_custom_call.1} parent=0
    _
  %s4 = ssub.s32 1, %s2
  %s5 = scalar_select 0, %s4, %s2
  loop: start=0, step=1, limit=4
  $region2: #{tpu_custom_call.1} parent=0 // loop_pre_header
    _
  $region3: #{tpu_custom_call.1} parent=0 // loop_header
    %s7 = sphi 0, %s11
    %p8 = scmp.ge.s32.totalorder %s7, 4
    %s14 = sphi 0, %s26
    %s15 = sphi 0, %s22
    %s16 = sphi 0, %s14
    %s17 = sphi 0, %s15
    %s18 = sphi 0, %s16
    %s19 = sphi 0, %s17
    %s31 = sphi 0, %s33
    %s34 = sphi 0, %s31
    %s35 = sphi 0, %s34
    %s51 = sphi 0, %s35
    %s59 = sphi 0, %s61
    %s62 = sphi 0, %s59
    %s63 = sphi 0, %s62
    %s79 = sphi 0, %s63
  $region4: #{tpu_custom_call.1} parent=0 // loop_header_branch
    %10 = sbr.rel (%p8) target = $region8
  $region5: #{tpu_custom_call.1} parent=0 // loop_body
    %s12 = ssub.s32 %s7, 1
    %s13 = ssub.s32 %s7, 2
    %s20 = sadd.s32 1, %s15
    %p21 = scmp.ge.s32.totalorder %s20, 2
    %s22 = scalar_select %p21, 0, %s20
    %s23 = sadd.s32 1, %s14
    %s24 = scalar_select %p21, %s23, %s14
    %p25 = scmp.ge.s32.totalorder %s24, 1
    %s26 = scalar_select %p25, 0, %s24
    %s27 = ssub.s32 %s14, %s26
    %s28 = ssub.s32 %s15, %s22
    %s29 = sor.u32 %s27, %s28
    %p30 = scmp.eq.s32.totalorder %s29, 0
    %s32 = sadd.s32 %s31, 1
    %s33 = scalar_select %p30, %s31, %s32
    %p36 = pneg %p30
    %p37 = scmp.eq.s32.totalorder %s7, 1
    %p38 = por %p36, %p37
    %p39 = scmp.ne.s32.totalorder %s31, %s34
    %p40 = scmp.eq.s32.totalorder %s7, 0
    %p41 = por %p39, %p40
    %p42 = scmp.ne.s32.totalorder %s31, %s34
    %p43 = scmp.eq.s32.totalorder %s12, 1
    %p44 = por %p42, %p43
    %p45 = scmp.ne.s32.totalorder %s34, %s35
    %p46 = scmp.eq.s32.totalorder %s12, 0
    %p47 = por %p45, %p46
    %p48 = scmp.ne.s32.totalorder %s34, %s35
    %p49 = scmp.eq.s32.totalorder %s13, 1
    %p50 = por %p48, %p49
    %p52 = scmp.ne.s32.totalorder %s35, %s51
    %p53 = scmp.eq.s32.totalorder %s13, 0
    %p54 = por %p52, %p53
    %s55 = ssub.s32 %s14, %s26
    %s56 = ssub.s32 %s15, %s22
    %s57 = sor.u32 %s55, %s56
    %p58 = scmp.eq.s32.totalorder %s57, 0
    %s60 = sadd.s32 %s59, 1
    %s61 = scalar_select %p58, %s59, %s60
    %p64 = pneg %p58
    %p65 = scmp.eq.s32.totalorder %s7, 1
    %p66 = por %p64, %p65
    %p67 = scmp.ne.s32.totalorder %s59, %s62
    %p68 = scmp.eq.s32.totalorder %s7, 0
    %p69 = por %p67, %p68
    %p70 = scmp.ne.s32.totalorder %s59, %s62
    %p71 = scmp.eq.s32.totalorder %s12, 1
    %p72 = por %p70, %p71
    %p73 = scmp.ne.s32.totalorder %s62, %s63
    %p74 = scmp.eq.s32.totalorder %s12, 0
    %p75 = por %p73, %p74
    %p76 = scmp.ne.s32.totalorder %s62, %s63
    %p77 = scmp.eq.s32.totalorder %s13, 1
    %p78 = por %p76, %p77
    %p80 = scmp.ne.s32.totalorder %s63, %s79
    %p81 = scmp.eq.s32.totalorder %s13, 0
    %p82 = por %p80, %p81
    %p83 = scmp.le.s32.totalorder 1, %s7
    %p84 = scmp.lt.s32.totalorder %s7, 3
    %p85 = pnand %p83, %p84
    %p86 = pneg %p85
    // Predicated region
    $region9: #{tpu_custom_call.1} parent=5 // pred_check
      _
    $region10: #{tpu_custom_call.1} parent=5 // pred_check_branch
      %88 = sbr.rel (%p85) target = $region12
    $region11: #{tpu_custom_call.1} parent=5 // pred_region
      %s89 = ssub.s32 %s7, 1
    $region12: #{tpu_custom_call.1} parent=5 // pred_fallthru
      _
    %p90 = scmp.lt.s32.totalorder %s7, 2
    // Predicated region
    $region13: #{tpu_custom_call.1} parent=5 // pred_check
      %p91 = pneg %p90
    $region14: #{tpu_custom_call.1} parent=5 // pred_check_branch
      %93 = sbr.rel (%p91) target = $region16
    $region15: #{tpu_custom_call.1} parent=5 // pred_region
      // Predicated region
      $region17: #{tpu_custom_call.1} parent=15 // pred_check
        %p94 = pneg %p41
      $region18: #{tpu_custom_call.1} parent=15 // pred_check_branch
        %96 = sbr.rel (%p94) target = $region20
      $region19: #{tpu_custom_call.1} parent=15 // pred_region
        %s97 = smul.u32 7, %s15
        %p98 = scmp.lt.s32.totalorder %s14, 0
        %s99 = scalar_select %p98, %s14, 0
        %p100 = scmp.lt.s32.totalorder %s97, 13
        %s101 = scalar_select %p100, %s97, 13
        %s102 = smul.addr %s101, 32
        %s103 = smul.addr %s99, 448
        %s104 = sadd.s32 %s102, %s103
        %s105 = smul.addr %s104, 8
        %s106 = scalar_lea.vmem %s0, %s105
        %s107 = smul.u32 7, %s15
      $region20: #{tpu_custom_call.1} parent=15 // pred_fallthru
        _
    $region16: #{tpu_custom_call.1} parent=5 // pred_fallthru
      _
    %p108 = scmp.le.s32.totalorder 1, %s7
    %p109 = scmp.lt.s32.totalorder %s7, 3
    %p110 = pnand %p108, %p109
    %p111 = pneg %p110
    // Predicated region
    $region21: #{tpu_custom_call.1} parent=5 // pred_check
      _
    $region22: #{tpu_custom_call.1} parent=5 // pred_check_branch
      %113 = sbr.rel (%p110) target = $region24
    $region23: #{tpu_custom_call.1} parent=5 // pred_region
      %s114 = ssub.s32 %s7, 1
      %s115 = smul.u32 7, %s17
      %p116 = scmp.lt.s32.totalorder %s16, 0
      %s117 = scalar_select %p116, %s16, 0
      %p118 = scmp.lt.s32.totalorder %s115, 13
      %s119 = scalar_select %p118, %s115, 13
      %s120 = smul.addr %s119, 32
      %s121 = smul.addr %s117, 448
      %s122 = sadd.s32 %s120, %s121
      %s123 = smul.addr %s122, 8
      %s124 = scalar_lea.vmem %s0, %s123
      %p125 = pneg %p47
      %p126 = pneg %p44
      %p127 = pneg %p75
      %p128 = pneg %p72
      %s129 = smul.u32 7, %s17
      %p130 = scmp.lt.s32.totalorder %s16, 0
      %s131 = scalar_select %p130, %s16, 0
      %p132 = scmp.lt.s32.totalorder %s129, 13
      %s133 = scalar_select %p132, %s129, 13
      %s134 = smul.addr %s133, 8
      %s135 = smul.addr %s131, 112
      %s136 = sadd.s32 %s134, %s135
      %s137 = smul.addr %s136, 8
      %s138 = scalar_lea.vmem %s1, %s137
      %s139 = smul.u32 7, %s17
      %p140 = scmp.lt.s32.totalorder %s16, 0
      %s141 = scalar_select %p140, %s16, 0
      %p142 = scmp.lt.s32.totalorder %s139, 13
      %s143 = scalar_select %p142, %s139, 13
      %s144 = smul.addr %s143, 32
      %s145 = smul.addr %s141, 448
      %s146 = sadd.s32 %s144, %s145
      %s147 = smul.addr %s146, 8
      %s148 = scalar_lea.vmem %s0, %s147
      %s149 = smul.u32 7, %s17
      %s150 = smul.u32 7, %s17
      %p151 = scmp.lt.s32.totalorder %s16, 0
      %s152 = scalar_select %p151, %s16, 0
      %p153 = scmp.lt.s32.totalorder %s150, 13
      %s154 = scalar_select %p153, %s150, 13
      %s155 = smul.addr %s154, 8
      %s156 = smul.addr %s152, 112
      %s157 = sadd.s32 %s155, %s156
      %s158 = smul.addr %s157, 8
      %s159 = scalar_lea.vmem %s1, %s158
      %s160 = smul.u32 7, %s17
      %v161 = vld [vmem:[%s148] sm:$0xff]
      %v162 = vld [vmem:[%s148 + $0x8] sm:$0xff]
      %v163 = vld [vmem:[%s148 + $0x10] sm:$0xff]
      %v164 = vld [vmem:[%s148 + $0x18] sm:$0xff]
      %v165 = vld [vmem:[%s148 + $0x20] sm:$0xff]
      %v166 = vld [vmem:[%s148 + $0x28] sm:$0xff]
      %v167 = vld [vmem:[%s148 + $0x30] sm:$0xff]
      %v168 = vld [vmem:[%s148 + $0x38] sm:$0xff]
      %v169 = vld [vmem:[%s148 + $0x40] sm:$0x3f]
      %v170 = vld [vmem:[%s148 + $0x48] sm:$0x3f]
      %v171 = vld [vmem:[%s148 + $0x50] sm:$0x3f]
      %v172 = vld [vmem:[%s148 + $0x58] sm:$0x3f]
      %v173 = vld [vmem:[%s148 + $0x60] sm:$0x3f]
      %v174 = vld [vmem:[%s148 + $0x68] sm:$0x3f]
      %v175 = vld [vmem:[%s148 + $0x70] sm:$0x3f]
      %v176 = vld [vmem:[%s148 + $0x78] sm:$0x3f]
      %v177 = vld [vmem:[%s148 + $0x100] sm:$0xff]
      %v178 = vld [vmem:[%s148 + $0x108] sm:$0xff]
      %v179 = vld [vmem:[%s148 + $0x110] sm:$0xff]
      %v180 = vld [vmem:[%s148 + $0x118] sm:$0xff]
      %v181 = vld [vmem:[%s148 + $0x120] sm:$0xff]
      %v182 = vld [vmem:[%s148 + $0x128] sm:$0xff]
      %v183 = vld [vmem:[%s148 + $0x130] sm:$0xff]
      %v184 = vld [vmem:[%s148 + $0x138] sm:$0xff]
      %v185 = vld [vmem:[%s148 + $0x140] sm:$0x3f]
      %v186 = vld [vmem:[%s148 + $0x148] sm:$0x3f]
      %v187 = vld [vmem:[%s148 + $0x150] sm:$0x3f]
      %v188 = vld [vmem:[%s148 + $0x158] sm:$0x3f]
      %v189 = vld [vmem:[%s148 + $0x160] sm:$0x3f]
      %v190 = vld [vmem:[%s148 + $0x168] sm:$0x3f]
      %v191 = vld [vmem:[%s148 + $0x170] sm:$0x3f]
      %v192 = vld [vmem:[%s148 + $0x178] sm:$0x3f]
      %v193 = vld [vmem:[%s148 + $0x200] sm:$0xff]
      %v194 = vld [vmem:[%s148 + $0x208] sm:$0xff]
      %v195 = vld [vmem:[%s148 + $0x210] sm:$0xff]
      %v196 = vld [vmem:[%s148 + $0x218] sm:$0xff]
      %v197 = vld [vmem:[%s148 + $0x220] sm:$0xff]
      %v198 = vld [vmem:[%s148 + $0x228] sm:$0xff]
      %v199 = vld [vmem:[%s148 + $0x230] sm:$0xff]
      %v200 = vld [vmem:[%s148 + $0x238] sm:$0xff]
      %v201 = vld [vmem:[%s148 + $0x240] sm:$0x3f]
      %v202 = vld [vmem:[%s148 + $0x248] sm:$0x3f]
      %v203 = vld [vmem:[%s148 + $0x250] sm:$0x3f]
      %v204 = vld [vmem:[%s148 + $0x258] sm:$0x3f]
      %v205 = vld [vmem:[%s148 + $0x260] sm:$0x3f]
      %v206 = vld [vmem:[%s148 + $0x268] sm:$0x3f]
      %v207 = vld [vmem:[%s148 + $0x270] sm:$0x3f]
      %v208 = vld [vmem:[%s148 + $0x278] sm:$0x3f]
      %v209 = vld [vmem:[%s148 + $0x300] sm:$0xff]
      %v210 = vld [vmem:[%s148 + $0x308] sm:$0xff]
      %v211 = vld [vmem:[%s148 + $0x310] sm:$0xff]
      %v212 = vld [vmem:[%s148 + $0x318] sm:$0xff]
      %v213 = vld [vmem:[%s148 + $0x320] sm:$0xff]
      %v214 = vld [vmem:[%s148 + $0x328] sm:$0xff]
      %v215 = vld [vmem:[%s148 + $0x330] sm:$0xff]
      %v216 = vld [vmem:[%s148 + $0x338] sm:$0xff]
      %v217 = vld [vmem:[%s148 + $0x340] sm:$0x3f]
      %v218 = vld [vmem:[%s148 + $0x348] sm:$0x3f]
      %v219 = vld [vmem:[%s148 + $0x350] sm:$0x3f]
      %v220 = vld [vmem:[%s148 + $0x358] sm:$0x3f]
      %v221 = vld [vmem:[%s148 + $0x360] sm:$0x3f]
      %v222 = vld [vmem:[%s148 + $0x368] sm:$0x3f]
      %v223 = vld [vmem:[%s148 + $0x370] sm:$0x3f]
      %v224 = vld [vmem:[%s148 + $0x378] sm:$0x3f]
      %v225 = vld [vmem:[%s148 + $0x400] sm:$0xff]
      %v226 = vld [vmem:[%s148 + $0x408] sm:$0xff]
      %v227 = vld [vmem:[%s148 + $0x410] sm:$0xff]
      %v228 = vld [vmem:[%s148 + $0x418] sm:$0xff]
      %v229 = vld [vmem:[%s148 + $0x420] sm:$0xff]
      %v230 = vld [vmem:[%s148 + $0x428] sm:$0xff]
      %v231 = vld [vmem:[%s148 + $0x430] sm:$0xff]
      %v232 = vld [vmem:[%s148 + $0x438] sm:$0xff]
      %v233 = vld [vmem:[%s148 + $0x440] sm:$0x3f]
      %v234 = vld [vmem:[%s148 + $0x448] sm:$0x3f]
      %v235 = vld [vmem:[%s148 + $0x450] sm:$0x3f]
      %v236 = vld [vmem:[%s148 + $0x458] sm:$0x3f]
      %v237 = vld [vmem:[%s148 + $0x460] sm:$0x3f]
      %v238 = vld [vmem:[%s148 + $0x468] sm:$0x3f]
      %v239 = vld [vmem:[%s148 + $0x470] sm:$0x3f]
      %v240 = vld [vmem:[%s148 + $0x478] sm:$0x3f]
      %v241 = vld [vmem:[%s148 + $0x500] sm:$0xff]
      %v242 = vld [vmem:[%s148 + $0x508] sm:$0xff]
      %v243 = vld [vmem:[%s148 + $0x510] sm:$0xff]
      %v244 = vld [vmem:[%s148 + $0x518] sm:$0xff]
      %v245 = vld [vmem:[%s148 + $0x520] sm:$0xff]
      %v246 = vld [vmem:[%s148 + $0x528] sm:$0xff]
      %v247 = vld [vmem:[%s148 + $0x530] sm:$0xff]
      %v248 = vld [vmem:[%s148 + $0x538] sm:$0xff]
      %v249 = vld [vmem:[%s148 + $0x540] sm:$0x3f]
      %v250 = vld [vmem:[%s148 + $0x548] sm:$0x3f]
      %v251 = vld [vmem:[%s148 + $0x550] sm:$0x3f]
      %v252 = vld [vmem:[%s148 + $0x558] sm:$0x3f]
      %v253 = vld [vmem:[%s148 + $0x560] sm:$0x3f]
      %v254 = vld [vmem:[%s148 + $0x568] sm:$0x3f]
      %v255 = vld [vmem:[%s148 + $0x570] sm:$0x3f]
      %v256 = vld [vmem:[%s148 + $0x578] sm:$0x3f]
      %v257 = vld [vmem:[%s148 + $0x600] sm:$0xff]
      %v258 = vld [vmem:[%s148 + $0x608] sm:$0xff]
      %v259 = vld [vmem:[%s148 + $0x610] sm:$0xff]
      %v260 = vld [vmem:[%s148 + $0x618] sm:$0xff]
      %v261 = vld [vmem:[%s148 + $0x620] sm:$0xff]
      %v262 = vld [vmem:[%s148 + $0x628] sm:$0xff]
      %v263 = vld [vmem:[%s148 + $0x630] sm:$0xff]
      %v264 = vld [vmem:[%s148 + $0x638] sm:$0xff]
      %v265 = vld [vmem:[%s148 + $0x640] sm:$0x3f]
      %v266 = vld [vmem:[%s148 + $0x648] sm:$0x3f]
      %v267 = vld [vmem:[%s148 + $0x650] sm:$0x3f]
      %v268 = vld [vmem:[%s148 + $0x658] sm:$0x3f]
      %v269 = vld [vmem:[%s148 + $0x660] sm:$0x3f]
      %v270 = vld [vmem:[%s148 + $0x668] sm:$0x3f]
      %v271 = vld [vmem:[%s148 + $0x670] sm:$0x3f]
      %v272 = vld [vmem:[%s148 + $0x678] sm:$0x3f]
      %s273 = scalar_lea.vmem %s148, 128
      %v274 = vld [vmem:[%s273] sm:$0xff]
      %v275 = vld [vmem:[%s273 + $0x8] sm:$0xff]
      %v276 = vld [vmem:[%s273 + $0x10] sm:$0xff]
      %v277 = vld [vmem:[%s273 + $0x18] sm:$0xff]
      %v278 = vld [vmem:[%s273 + $0x20] sm:$0xff]
      %v279 = vld [vmem:[%s273 + $0x28] sm:$0xff]
      %v280 = vld [vmem:[%s273 + $0x30] sm:$0xff]
      %v281 = vld [vmem:[%s273 + $0x38] sm:$0xff]
      %v282 = vld [vmem:[%s273 + $0x40] sm:$0x3f]
      %v283 = vld [vmem:[%s273 + $0x48] sm:$0x3f]
      %v284 = vld [vmem:[%s273 + $0x50] sm:$0x3f]
      %v285 = vld [vmem:[%s273 + $0x58] sm:$0x3f]
      %v286 = vld [vmem:[%s273 + $0x60] sm:$0x3f]
      %v287 = vld [vmem:[%s273 + $0x68] sm:$0x3f]
      %v288 = vld [vmem:[%s273 + $0x70] sm:$0x3f]
      %v289 = vld [vmem:[%s273 + $0x78] sm:$0x3f]
      %v290 = vld [vmem:[%s273 + $0x100] sm:$0xff]
      %v291 = vld [vmem:[%s273 + $0x108] sm:$0xff]
      %v292 = vld [vmem:[%s273 + $0x110] sm:$0xff]
      %v293 = vld [vmem:[%s273 + $0x118] sm:$0xff]
      %v294 = vld [vmem:[%s273 + $0x120] sm:$0xff]
      %v295 = vld [vmem:[%s273 + $0x128] sm:$0xff]
      %v296 = vld [vmem:[%s273 + $0x130] sm:$0xff]
      %v297 = vld [vmem:[%s273 + $0x138] sm:$0xff]
      %v298 = vld [vmem:[%s273 + $0x140] sm:$0x3f]
      %v299 = vld [vmem:[%s273 + $0x148] sm:$0x3f]
      %v300 = vld [vmem:[%s273 + $0x150] sm:$0x3f]
      %v301 = vld [vmem:[%s273 + $0x158] sm:$0x3f]
      %v302 = vld [vmem:[%s273 + $0x160] sm:$0x3f]
      %v303 = vld [vmem:[%s273 + $0x168] sm:$0x3f]
      %v304 = vld [vmem:[%s273 + $0x170] sm:$0x3f]
      %v305 = vld [vmem:[%s273 + $0x178] sm:$0x3f]
      %v306 = vld [vmem:[%s273 + $0x200] sm:$0xff]
      %v307 = vld [vmem:[%s273 + $0x208] sm:$0xff]
      %v308 = vld [vmem:[%s273 + $0x210] sm:$0xff]
      %v309 = vld [vmem:[%s273 + $0x218] sm:$0xff]
      %v310 = vld [vmem:[%s273 + $0x220] sm:$0xff]
      %v311 = vld [vmem:[%s273 + $0x228] sm:$0xff]
      %v312 = vld [vmem:[%s273 + $0x230] sm:$0xff]
      %v313 = vld [vmem:[%s273 + $0x238] sm:$0xff]
      %v314 = vld [vmem:[%s273 + $0x240] sm:$0x3f]
      %v315 = vld [vmem:[%s273 + $0x248] sm:$0x3f]
      %v316 = vld [vmem:[%s273 + $0x250] sm:$0x3f]
      %v317 = vld [vmem:[%s273 + $0x258] sm:$0x3f]
      %v318 = vld [vmem:[%s273 + $0x260] sm:$0x3f]
      %v319 = vld [vmem:[%s273 + $0x268] sm:$0x3f]
      %v320 = vld [vmem:[%s273 + $0x270] sm:$0x3f]
      %v321 = vld [vmem:[%s273 + $0x278] sm:$0x3f]
      %v322 = vld [vmem:[%s273 + $0x300] sm:$0xff]
      %v323 = vld [vmem:[%s273 + $0x308] sm:$0xff]
      %v324 = vld [vmem:[%s273 + $0x310] sm:$0xff]
      %v325 = vld [vmem:[%s273 + $0x318] sm:$0xff]
      %v326 = vld [vmem:[%s273 + $0x320] sm:$0xff]
      %v327 = vld [vmem:[%s273 + $0x328] sm:$0xff]
      %v328 = vld [vmem:[%s273 + $0x330] sm:$0xff]
      %v329 = vld [vmem:[%s273 + $0x338] sm:$0xff]
      %v330 = vld [vmem:[%s273 + $0x340] sm:$0x3f]
      %v331 = vld [vmem:[%s273 + $0x348] sm:$0x3f]
      %v332 = vld [vmem:[%s273 + $0x350] sm:$0x3f]
      %v333 = vld [vmem:[%s273 + $0x358] sm:$0x3f]
      %v334 = vld [vmem:[%s273 + $0x360] sm:$0x3f]
      %v335 = vld [vmem:[%s273 + $0x368] sm:$0x3f]
      %v336 = vld [vmem:[%s273 + $0x370] sm:$0x3f]
      %v337 = vld [vmem:[%s273 + $0x378] sm:$0x3f]
      %v338 = vld [vmem:[%s273 + $0x400] sm:$0xff]
      %v339 = vld [vmem:[%s273 + $0x408] sm:$0xff]
      %v340 = vld [vmem:[%s273 + $0x410] sm:$0xff]
      %v341 = vld [vmem:[%s273 + $0x418] sm:$0xff]
      %v342 = vld [vmem:[%s273 + $0x420] sm:$0xff]
      %v343 = vld [vmem:[%s273 + $0x428] sm:$0xff]
      %v344 = vld [vmem:[%s273 + $0x430] sm:$0xff]
      %v345 = vld [vmem:[%s273 + $0x438] sm:$0xff]
      %v346 = vld [vmem:[%s273 + $0x440] sm:$0x3f]
      %v347 = vld [vmem:[%s273 + $0x448] sm:$0x3f]
      %v348 = vld [vmem:[%s273 + $0x450] sm:$0x3f]
      %v349 = vld [vmem:[%s273 + $0x458] sm:$0x3f]
      %v350 = vld [vmem:[%s273 + $0x460] sm:$0x3f]
      %v351 = vld [vmem:[%s273 + $0x468] sm:$0x3f]
      %v352 = vld [vmem:[%s273 + $0x470] sm:$0x3f]
      %v353 = vld [vmem:[%s273 + $0x478] sm:$0x3f]
      %v354 = vld [vmem:[%s273 + $0x500] sm:$0xff]
      %v355 = vld [vmem:[%s273 + $0x508] sm:$0xff]
      %v356 = vld [vmem:[%s273 + $0x510] sm:$0xff]
      %v357 = vld [vmem:[%s273 + $0x518] sm:$0xff]
      %v358 = vld [vmem:[%s273 + $0x520] sm:$0xff]
      %v359 = vld [vmem:[%s273 + $0x528] sm:$0xff]
      %v360 = vld [vmem:[%s273 + $0x530] sm:$0xff]
      %v361 = vld [vmem:[%s273 + $0x538] sm:$0xff]
      %v362 = vld [vmem:[%s273 + $0x540] sm:$0x3f]
      %v363 = vld [vmem:[%s273 + $0x548] sm:$0x3f]
      %v364 = vld [vmem:[%s273 + $0x550] sm:$0x3f]
      %v365 = vld [vmem:[%s273 + $0x558] sm:$0x3f]
      %v366 = vld [vmem:[%s273 + $0x560] sm:$0x3f]
      %v367 = vld [vmem:[%s273 + $0x568] sm:$0x3f]
      %v368 = vld [vmem:[%s273 + $0x570] sm:$0x3f]
      %v369 = vld [vmem:[%s273 + $0x578] sm:$0x3f]
      %v370 = vld [vmem:[%s273 + $0x600] sm:$0xff]
      %v371 = vld [vmem:[%s273 + $0x608] sm:$0xff]
      %v372 = vld [vmem:[%s273 + $0x610] sm:$0xff]
      %v373 = vld [vmem:[%s273 + $0x618] sm:$0xff]
      %v374 = vld [vmem:[%s273 + $0x620] sm:$0xff]
      %v375 = vld [vmem:[%s273 + $0x628] sm:$0xff]
      %v376 = vld [vmem:[%s273 + $0x630] sm:$0xff]
      %v377 = vld [vmem:[%s273 + $0x638] sm:$0xff]
      %v378 = vld [vmem:[%s273 + $0x640] sm:$0x3f]
      %v379 = vld [vmem:[%s273 + $0x648] sm:$0x3f]
      %v380 = vld [vmem:[%s273 + $0x650] sm:$0x3f]
      %v381 = vld [vmem:[%s273 + $0x658] sm:$0x3f]
      %v382 = vld [vmem:[%s273 + $0x660] sm:$0x3f]
      %v383 = vld [vmem:[%s273 + $0x668] sm:$0x3f]
      %v384 = vld [vmem:[%s273 + $0x670] sm:$0x3f]
      %v385 = vld [vmem:[%s273 + $0x678] sm:$0x3f]
      %v386 = vmax.f32 %v161, %v274
      %v387 = vmax.f32 %v162, %v275
      %v388 = vmax.f32 %v163, %v276
      %v389 = vmax.f32 %v164, %v277
      %v390 = vmax.f32 %v165, %v278
      %v391 = vmax.f32 %v166, %v279
      %v392 = vmax.f32 %v167, %v280
      %v393 = vmax.f32 %v168, %v281
      %v394 = vmax.f32 %v169, %v282
      %v395 = vmax.f32 %v170, %v283
      %v396 = vmax.f32 %v171, %v284
      %v397 = vmax.f32 %v172, %v285
      %v398 = vmax.f32 %v173, %v286
      %v399 = vmax.f32 %v174, %v287
      %v400 = vmax.f32 %v175, %v288
      %v401 = vmax.f32 %v176, %v289
      %v402 = vmax.f32 %v177, %v290
      %v403 = vmax.f32 %v178, %v291
      %v404 = vmax.f32 %v179, %v292
      %v405 = vmax.f32 %v180, %v293
      %v406 = vmax.f32 %v181, %v294
      %v407 = vmax.f32 %v182, %v295
      %v408 = vmax.f32 %v183, %v296
      %v409 = vmax.f32 %v184, %v297
      %v410 = vmax.f32 %v185, %v298
      %v411 = vmax.f32 %v186, %v299
      %v412 = vmax.f32 %v187, %v300
      %v413 = vmax.f32 %v188, %v301
      %v414 = vmax.f32 %v189, %v302
      %v415 = vmax.f32 %v190, %v303
      %v416 = vmax.f32 %v191, %v304
      %v417 = vmax.f32 %v192, %v305
      %v418 = vmax.f32 %v193, %v306
      %v419 = vmax.f32 %v194, %v307
      %v420 = vmax.f32 %v195, %v308
      %v421 = vmax.f32 %v196, %v309
      %v422 = vmax.f32 %v197, %v310
      %v423 = vmax.f32 %v198, %v311
      %v424 = vmax.f32 %v199, %v312
      %v425 = vmax.f32 %v200, %v313
      %v426 = vmax.f32 %v201, %v314
      %v427 = vmax.f32 %v202, %v315
      %v428 = vmax.f32 %v203, %v316
      %v429 = vmax.f32 %v204, %v317
      %v430 = vmax.f32 %v205, %v318
      %v431 = vmax.f32 %v206, %v319
      %v432 = vmax.f32 %v207, %v320
      %v433 = vmax.f32 %v208, %v321
      %v434 = vmax.f32 %v209, %v322
      %v435 = vmax.f32 %v210, %v323
      %v436 = vmax.f32 %v211, %v324
      %v437 = vmax.f32 %v212, %v325
      %v438 = vmax.f32 %v213, %v326
      %v439 = vmax.f32 %v214, %v327
      %v440 = vmax.f32 %v215, %v328
      %v441 = vmax.f32 %v216, %v329
      %v442 = vmax.f32 %v217, %v330
      %v443 = vmax.f32 %v218, %v331
      %v444 = vmax.f32 %v219, %v332
      %v445 = vmax.f32 %v220, %v333
      %v446 = vmax.f32 %v221, %v334
      %v447 = vmax.f32 %v222, %v335
      %v448 = vmax.f32 %v223, %v336
      %v449 = vmax.f32 %v224, %v337
      %v450 = vmax.f32 %v225, %v338
      %v451 = vmax.f32 %v226, %v339
      %v452 = vmax.f32 %v227, %v340
      %v453 = vmax.f32 %v228, %v341
      %v454 = vmax.f32 %v229, %v342
      %v455 = vmax.f32 %v230, %v343
      %v456 = vmax.f32 %v231, %v344
      %v457 = vmax.f32 %v232, %v345
      %v458 = vmax.f32 %v233, %v346
      %v459 = vmax.f32 %v234, %v347
      %v460 = vmax.f32 %v235, %v348
      %v461 = vmax.f32 %v236, %v349
      %v462 = vmax.f32 %v237, %v350
      %v463 = vmax.f32 %v238, %v351
      %v464 = vmax.f32 %v239, %v352
      %v465 = vmax.f32 %v240, %v353
      %v466 = vmax.f32 %v241, %v354
      %v467 = vmax.f32 %v242, %v355
      %v468 = vmax.f32 %v243, %v356
      %v469 = vmax.f32 %v244, %v357
      %v470 = vmax.f32 %v245, %v358
      %v471 = vmax.f32 %v246, %v359
      %v472 = vmax.f32 %v247, %v360
      %v473 = vmax.f32 %v248, %v361
      %v474 = vmax.f32 %v249, %v362
      %v475 = vmax.f32 %v250, %v363
      %v476 = vmax.f32 %v251, %v364
      %v477 = vmax.f32 %v252, %v365
      %v478 = vmax.f32 %v253, %v366
      %v479 = vmax.f32 %v254, %v367
      %v480 = vmax.f32 %v255, %v368
      %v481 = vmax.f32 %v256, %v369
      %v482 = vmax.f32 %v257, %v370
      %v483 = vmax.f32 %v258, %v371
      %v484 = vmax.f32 %v259, %v372
      %v485 = vmax.f32 %v260, %v373
      %v486 = vmax.f32 %v261, %v374
      %v487 = vmax.f32 %v262, %v375
      %v488 = vmax.f32 %v263, %v376
      %v489 = vmax.f32 %v264, %v377
      %v490 = vmax.f32 %v265, %v378
      %v491 = vmax.f32 %v266, %v379
      %v492 = vmax.f32 %v267, %v380
      %v493 = vmax.f32 %v268, %v381
      %v494 = vmax.f32 %v269, %v382
      %v495 = vmax.f32 %v270, %v383
      %v496 = vmax.f32 %v271, %v384
      %v497 = vmax.f32 %v272, %v385
      %v498 = vmax.f32 %v386, %v390
      %v499 = vmax.f32 %v387, %v391
      %v500 = vmax.f32 %v388, %v392
      %v501 = vmax.f32 %v389, %v393
      %v502 = vmax.f32 %v394, %v398
      %v503 = vmax.f32 %v395, %v399
      %v504 = vmax.f32 %v396, %v400
      %v505 = vmax.f32 %v397, %v401
      %v506 = vmax.f32 %v402, %v406
      %v507 = vmax.f32 %v403, %v407
      %v508 = vmax.f32 %v404, %v408
      %v509 = vmax.f32 %v405, %v409
      %v510 = vmax.f32 %v410, %v414
      %v511 = vmax.f32 %v411, %v415
      %v512 = vmax.f32 %v412, %v416
      %v513 = vmax.f32 %v413, %v417
      %v514 = vmax.f32 %v418, %v422
      %v515 = vmax.f32 %v419, %v423
      %v516 = vmax.f32 %v420, %v424
      %v517 = vmax.f32 %v421, %v425
      %v518 = vmax.f32 %v426, %v430
      %v519 = vmax.f32 %v427, %v431
      %v520 = vmax.f32 %v428, %v432
      %v521 = vmax.f32 %v429, %v433
      %v522 = vmax.f32 %v434, %v438
      %v523 = vmax.f32 %v435, %v439
      %v524 = vmax.f32 %v436, %v440
      %v525 = vmax.f32 %v437, %v441
      %v526 = vmax.f32 %v442, %v446
      %v527 = vmax.f32 %v443, %v447
      %v528 = vmax.f32 %v444, %v448
      %v529 = vmax.f32 %v445, %v449
      %v530 = vmax.f32 %v450, %v454
      %v531 = vmax.f32 %v451, %v455
      %v532 = vmax.f32 %v452, %v456
      %v533 = vmax.f32 %v453, %v457
      %v534 = vmax.f32 %v458, %v462
      %v535 = vmax.f32 %v459, %v463
      %v536 = vmax.f32 %v460, %v464
      %v537 = vmax.f32 %v461, %v465
      %v538 = vmax.f32 %v466, %v470
      %v539 = vmax.f32 %v467, %v471
      %v540 = vmax.f32 %v468, %v472
      %v541 = vmax.f32 %v469, %v473
      %v542 = vmax.f32 %v474, %v478
      %v543 = vmax.f32 %v475, %v479
      %v544 = vmax.f32 %v476, %v480
      %v545 = vmax.f32 %v477, %v481
      %v546 = vmax.f32 %v482, %v486
      %v547 = vmax.f32 %v483, %v487
      %v548 = vmax.f32 %v484, %v488
      %v549 = vmax.f32 %v485, %v489
      %v550 = vmax.f32 %v490, %v494
      %v551 = vmax.f32 %v491, %v495
      %v552 = vmax.f32 %v492, %v496
      %v553 = vmax.f32 %v493, %v497
      %554 = vst [vmem:[%s159] sm:$0xff] %v498
      %555 = vst [vmem:[%s159 + $0x8] sm:$0xff] %v499
      %556 = vst [vmem:[%s159 + $0x10] sm:$0xff] %v500
      %557 = vst [vmem:[%s159 + $0x18] sm:$0xff] %v501
      %558 = vst [vmem:[%s159 + $0x20] sm:$0x3f] %v502
      %559 = vst [vmem:[%s159 + $0x28] sm:$0x3f] %v503
      %560 = vst [vmem:[%s159 + $0x30] sm:$0x3f] %v504
      %561 = vst [vmem:[%s159 + $0x38] sm:$0x3f] %v505
      %562 = vst [vmem:[%s159 + $0x40] sm:$0xff] %v506
      %563 = vst [vmem:[%s159 + $0x48] sm:$0xff] %v507
      %564 = vst [vmem:[%s159 + $0x50] sm:$0xff] %v508
      %565 = vst [vmem:[%s159 + $0x58] sm:$0xff] %v509
      %566 = vst [vmem:[%s159 + $0x60] sm:$0x3f] %v510
      %567 = vst [vmem:[%s159 + $0x68] sm:$0x3f] %v511
      %568 = vst [vmem:[%s159 + $0x70] sm:$0x3f] %v512
      %569 = vst [vmem:[%s159 + $0x78] sm:$0x3f] %v513
      %570 = vst [vmem:[%s159 + $0x80] sm:$0xff] %v514
      %571 = vst [vmem:[%s159 + $0x88] sm:$0xff] %v515
      %572 = vst [vmem:[%s159 + $0x90] sm:$0xff] %v516
      %573 = vst [vmem:[%s159 + $0x98] sm:$0xff] %v517
      %574 = vst [vmem:[%s159 + $0xa0] sm:$0x3f] %v518
      %575 = vst [vmem:[%s159 + $0xa8] sm:$0x3f] %v519
      %576 = vst [vmem:[%s159 + $0xb0] sm:$0x3f] %v520
      %577 = vst [vmem:[%s159 + $0xb8] sm:$0x3f] %v521
      %578 = vst [vmem:[%s159 + $0xc0] sm:$0xff] %v522
      %579 = vst [vmem:[%s159 + $0xc8] sm:$0xff] %v523
      %580 = vst [vmem:[%s159 + $0xd0] sm:$0xff] %v524
      %581 = vst [vmem:[%s159 + $0xd8] sm:$0xff] %v525
      %582 = vst [vmem:[%s159 + $0xe0] sm:$0x3f] %v526
      %583 = vst [vmem:[%s159 + $0xe8] sm:$0x3f] %v527
      %584 = vst [vmem:[%s159 + $0xf0] sm:$0x3f] %v528
      %585 = vst [vmem:[%s159 + $0xf8] sm:$0x3f] %v529
      %586 = vst [vmem:[%s159 + $0x100] sm:$0xff] %v530
      %587 = vst [vmem:[%s159 + $0x108] sm:$0xff] %v531
      %588 = vst [vmem:[%s159 + $0x110] sm:$0xff] %v532
      %589 = vst [vmem:[%s159 + $0x118] sm:$0xff] %v533
      %590 = vst [vmem:[%s159 + $0x120] sm:$0x3f] %v534
      %591 = vst [vmem:[%s159 + $0x128] sm:$0x3f] %v535
      %592 = vst [vmem:[%s159 + $0x130] sm:$0x3f] %v536
      %593 = vst [vmem:[%s159 + $0x138] sm:$0x3f] %v537
      %594 = vst [vmem:[%s159 + $0x140] sm:$0xff] %v538
      %595 = vst [vmem:[%s159 + $0x148] sm:$0xff] %v539
      %596 = vst [vmem:[%s159 + $0x150] sm:$0xff] %v540
      %597 = vst [vmem:[%s159 + $0x158] sm:$0xff] %v541
      %598 = vst [vmem:[%s159 + $0x160] sm:$0x3f] %v542
      %599 = vst [vmem:[%s159 + $0x168] sm:$0x3f] %v543
      %600 = vst [vmem:[%s159 + $0x170] sm:$0x3f] %v544
      %601 = vst [vmem:[%s159 + $0x178] sm:$0x3f] %v545
      %602 = vst [vmem:[%s159 + $0x180] sm:$0xff] %v546
      %603 = vst [vmem:[%s159 + $0x188] sm:$0xff] %v547
      %604 = vst [vmem:[%s159 + $0x190] sm:$0xff] %v548
      %605 = vst [vmem:[%s159 + $0x198] sm:$0xff] %v549
      %606 = vst [vmem:[%s159 + $0x1a0] sm:$0x3f] %v550
      %607 = vst [vmem:[%s159 + $0x1a8] sm:$0x3f] %v551
      %608 = vst [vmem:[%s159 + $0x1b0] sm:$0x3f] %v552
      %609 = vst [vmem:[%s159 + $0x1b8] sm:$0x3f] %v553
      %s610 = smul.u32 7, %s17
      %p611 = scmp.lt.s32.totalorder %s16, 0
      %s612 = scalar_select %p611, %s16, 0
      %p613 = scmp.lt.s32.totalorder %s610, 13
      %s614 = scalar_select %p613, %s610, 13
      %s615 = smul.addr %s614, 8
      %s616 = smul.addr %s612, 112
      %s617 = sadd.s32 %s615, %s616
      %s618 = smul.addr %s617, 8
      %s619 = scalar_lea.vmem %s1, %s618
      // Predicated region
      $region25: #{tpu_custom_call.1} parent=23 // pred_check
        %p620 = pneg %p72
      $region26: #{tpu_custom_call.1} parent=23 // pred_check_branch
        %622 = sbr.rel (%p620) target = $region28
      $region27: #{tpu_custom_call.1} parent=23 // pred_region
        %s623 = smul.u32 7, %s17
      $region28: #{tpu_custom_call.1} parent=23 // pred_fallthru
        _
    $region24: #{tpu_custom_call.1} parent=5 // pred_fallthru
      _
    %p624 = scmp.le.s32.totalorder 2, %s7
    // Predicated region
    $region29: #{tpu_custom_call.1} parent=5 // pred_check
      %p625 = pneg %p624
    $region30: #{tpu_custom_call.1} parent=5 // pred_check_branch
      %627 = sbr.rel (%p625) target = $region32
    $region31: #{tpu_custom_call.1} parent=5 // pred_region
      %s628 = ssub.s32 %s7, 2
      // Predicated region
      $region33: #{tpu_custom_call.1} parent=31 // pred_check
        %p629 = pneg %p78
      $region34: #{tpu_custom_call.1} parent=31 // pred_check_branch
        %631 = sbr.rel (%p629) target = $region36
      $region35: #{tpu_custom_call.1} parent=31 // pred_region
        %s632 = smul.u32 7, %s19
        %p633 = scmp.lt.s32.totalorder %s18, 0
        %s634 = scalar_select %p633, %s18, 0
        %p635 = scmp.lt.s32.totalorder %s632, 13
        %s636 = scalar_select %p635, %s632, 13
        %s637 = smul.addr %s636, 8
        %s638 = smul.addr %s634, 112
        %s639 = sadd.s32 %s637, %s638
        %s640 = smul.addr %s639, 8
        %s641 = scalar_lea.vmem %s1, %s640
      $region36: #{tpu_custom_call.1} parent=31 // pred_fallthru
        _
    $region32: #{tpu_custom_call.1} parent=5 // pred_fallthru
      _
  $region6: #{tpu_custom_call.1} parent=0 // loop_footer
    %s11 = sadd.s32 1, %s7
  $region7: #{tpu_custom_call.1} parent=0 // loop_footer_branch
    %6 = sbr.rel target = $region3
  $region8: #{tpu_custom_call.1} parent=0 // loop_exit
    _

</llo_original>
